<compile_context>
chip_gen: v7x
topology: tpu7x:2x2x1
jax: 0.10.0
libtpu: 0.0.40
codegen_flags: <defaults>
</compile_context>

<pallas_src>
import jax
import jax.numpy as jnp
from jax.experimental import pallas as pl
from jax.experimental.pallas import tpu as pltpu

# ----------------- deterministic skeleton "parameters" -----------------
NUM_JOINTS = 8
PARENTS = [-1, 0, 1, 2, 1, 4, 1, 6]          # simple tree rooted at joint 0
OFFSETS = [
    (0.0, 0.0, 0.0),
    (0.0, 1.0, 0.0),
    (0.0, 0.9, 0.1),
    (0.0, 0.8, 0.0),
    (0.5, 0.7, 0.0),
    (0.6, 0.0, 0.0),
    (-0.5, 0.7, 0.0),
    (-0.6, 0.0, 0.0),
]
HAS_CHILD = [any(PARENTS[c] == j for c in range(NUM_JOINTS)) for j in range(NUM_JOINTS)]

TR_MAX = 256   # max sublane-rows (of 128 lanes) per grid step; multiple of 8


def _fk_kernel(rot_ref, pos_ref):
    """rot_ref: (J*4, TR, 128) quaternions (w,x,y,z per joint).  pos_ref: (J*3, TR, 128)."""
    tile = pos_ref.shape[1:]   # (TR, 128), static

    def as_array(v):
        if isinstance(v, float):
            return jnp.zeros(tile, jnp.float32) if v == 0.0 else jnp.full(tile, v, jnp.float32)
        return v

    def add(x, y):
        # trace-time pruning of adds with a constant zero
        if isinstance(x, float) and x == 0.0:
            return y
        if isinstance(y, float) and y == 0.0:
            return x
        return x + y

    def scaled(r, c):
        # r * c with trace-time pruning of c in {0, +1, -1}
        if c == 0.0:
            return 0.0
        if c == 1.0:
            return r
        if c == -1.0:
            return -r
        return r * c

    glob_R = {}   # joint -> list of 9 (TR,128) arrays (only joints with children)
    glob_p = {}   # joint -> list of 3 entries (python float const or (TR,128) array)

    for j in range(NUM_JOINTS):        # parents always precede children
        par = PARENTS[j]
        off = OFFSETS[j]

        # ---- global position of joint j:  p_j = p_parent + R_parent @ offset_j ----
        if par < 0:
            pj = [float(off[a]) for a in range(3)]
        else:
            Rp = glob_R[par]
            pp = glob_p[par]
            pj = []
            for a in range(3):
                v = pp[a]
                for k in range(3):
                    v = add(v, scaled(Rp[3 * a + k], float(off[k])))
                pj.append(v)
        glob_p[j] = pj
        for a in range(3):
            pos_ref[3 * j + a, :, :] = as_array(pj[a])   # dense (TR,128) slab store

        # ---- global rotation of joint j (only needed if j has children) ----
        if HAS_CHILD[j]:
            qw = rot_ref[4 * j + 0, :, :]
            qx = rot_ref[4 * j + 1, :, :]
            qy = rot_ref[4 * j + 2, :, :]
            qz = rot_ref[4 * j + 3, :, :]
            inv = jax.lax.rsqrt(qw * qw + qx * qx + qy * qy + qz * qz + 1e-8)
            qw, qx, qy, qz = qw * inv, qx * inv, qy * inv, qz * inv

            xx, yy, zz = qx * qx, qy * qy, qz * qz
            xy, xz, yz = qx * qy, qx * qz, qy * qz
            wx, wy, wz = qw * qx, qw * qy, qw * qz
            Rl = [
                1.0 - 2.0 * (yy + zz), 2.0 * (xy - wz),       2.0 * (xz + wy),
                2.0 * (xy + wz),       1.0 - 2.0 * (xx + zz), 2.0 * (yz - wx),
                2.0 * (xz - wy),       2.0 * (yz + wx),       1.0 - 2.0 * (xx + yy),
            ]
            if par < 0:
                glob_R[j] = Rl
            else:
                Rp = glob_R[par]
                glob_R[j] = [
                    Rp[3 * a + 0] * Rl[0 * 3 + b]
                    + Rp[3 * a + 1] * Rl[1 * 3 + b]
                    + Rp[3 * a + 2] * Rl[2 * 3 + b]
                    for a in range(3) for b in range(3)
                ]


@jax.jit
def skeleton_forward(rotations: jnp.ndarray) -> jnp.ndarray:
    """rotations: (B, T, J, 4) float32 -> global joint positions (B, T, J, 3)."""
    B, T, J, Q = rotations.shape
    assert J == NUM_JOINTS and Q == 4
    N = B * T

    rows = pl.cdiv(N, 128)                                # 128-lane rows needed
    tr = max(8, min(TR_MAX, ((rows + 7) // 8) * 8))       # rows per grid step (mult. of 8)
    rtot = ((rows + tr - 1) // tr) * tr                   # total rows, padded to grid
    npad = rtot * 128

    x = rotations.astype(jnp.float32).reshape(N, J * 4)
    x = jnp.pad(x, ((0, npad - N), (0, 0)))
    # (npad, 32) -> (rtot, 128, 32) -> component-major (32, rtot, 128): lane-dense
    x = jnp.transpose(x.reshape(rtot, 128, J * 4), (2, 0, 1))

    out = pl.pallas_call(
        _fk_kernel,
        out_shape=jax.ShapeDtypeStruct((J * 3, rtot, 128), jnp.float32),
        grid=(rtot // tr,),
        in_specs=[pl.BlockSpec((J * 4, tr, 128), lambda i: (0, i, 0))],
        out_specs=pl.BlockSpec((J * 3, tr, 128), lambda i: (0, i, 0)),
        compiler_params=pltpu.CompilerParams(
            dimension_semantics=("parallel",),
            vmem_limit_bytes=40 << 20,     # safe on v5e/v6e (128 MiB) and v7x (64 MiB)
        ),
    )(x)

    pos = jnp.transpose(out, (1, 2, 0)).reshape(npad, J * 3)[:N]
    return pos.reshape(B, T, J, 3)


# ----------------- pure-JAX reference for validation -----------------
def _quat_to_mat(q):
    w, x, y, z = q[..., 0], q[..., 1], q[..., 2], q[..., 3]
    rows = jnp.stack([
        1.0 - 2.0 * (y * y + z * z), 2.0 * (x * y - w * z),       2.0 * (x * z + w * y),
        2.0 * (x * y + w * z),       1.0 - 2.0 * (x * x + z * z), 2.0 * (y * z - w * x),
        2.0 * (x * z - w * y),       2.0 * (y * z + w * x),       1.0 - 2.0 * (x * x + y * y),
    ], axis=-1)
    return rows.reshape(q.shape[:-1] + (3, 3))


def skeleton_forward_ref(rotations):
    inv = jax.lax.rsqrt(jnp.sum(rotations * rotations, -1, keepdims=True) + 1e-8)
    q = rotations * inv
    R = _quat_to_mat(q)                                   # (B,T,J,3,3)
    offs = jnp.array(OFFSETS, jnp.float32)
    gR = [None] * NUM_JOINTS
    gp = [None] * NUM_JOINTS
    for j in range(NUM_JOINTS):
        p = PARENTS[j]
        if p < 0:
            gR[j] = R[..., j, :, :]
            gp[j] = jnp.broadcast_to(offs[j], R.shape[:2] + (3,))
        else:
            gR[j] = gR[p] @ R[..., j, :, :]
            gp[j] = gp[p] + jnp.einsum("btij,j->bti", gR[p], offs[j])
    return jnp.stack(gp, axis=2)                          # (B,T,J,3)


if __name__ == "__main__":
    key = jax.random.PRNGKey(0)
    B, T = 2, 8
    rotations = jax.random.normal(key, (B, T, NUM_JOINTS, 4), dtype=jnp.float32)

    pos = jax.block_until_ready(skeleton_forward(rotations))
    ref = jax.block_until_ready(skeleton_forward_ref(rotations))

    assert pos.shape == (B, T, NUM_JOINTS, 3)
    assert jnp.allclose(pos, ref, atol=1e-4, rtol=1e-4)
    print("KERNEL_OK")
</pallas_src>

<mosaic_0001>
module attributes {stable_mosaic.version = 11 : i64} {
  func.func @_fk_kernel(%arg0: i32, %arg1: memref<32x8x128xf32, #tpu.memory_space<vmem>>, %arg2: memref<24x8x128xf32, #tpu.memory_space<vmem>>) attributes {dimension_semantics = [#tpu.dimension_semantics<parallel>], iteration_bounds = array<i64: 1>, scalar_prefetch = 0 : i64, scratch_operands = 0 : i64, tpu.core_type = #tpu.core_type<tc>, window_params = [{transform_indices = @transform_0, window_bounds = array<i64: 32, 8, 128>}, {transform_indices = @transform_1, window_bounds = array<i64: 24, 8, 128>}]} {
    %cst = arith.constant 0.000000e+00 : f32
    %0 = vector.broadcast %cst : f32 to vector<8x128xf32>
    %c0 = arith.constant 0 : index
    %c0_0 = arith.constant 0 : index
    %c0_1 = arith.constant 0 : index
    %1 = vector.load %arg2[%c0, %c0_0, %c0_1] : memref<24x8x128xf32, #tpu.memory_space<vmem>>, vector<1x8x128xf32>
    %2 = vector.shape_cast %1 : vector<1x8x128xf32> to vector<8x128xf32>
    %3 = vector.shape_cast %0 : vector<8x128xf32> to vector<1x8x128xf32>
    tpu.vector_store %arg2[%c0, %c0_0, %c0_1], %3 {strides = array<i32>} : memref<24x8x128xf32, #tpu.memory_space<vmem>>, vector<1x8x128xf32>,
    %cst_2 = arith.constant 0.000000e+00 : f32
    %4 = vector.broadcast %cst_2 : f32 to vector<8x128xf32>
    %c1 = arith.constant 1 : index
    %c0_3 = arith.constant 0 : index
    %c0_4 = arith.constant 0 : index
    %5 = vector.load %arg2[%c1, %c0_3, %c0_4] : memref<24x8x128xf32, #tpu.memory_space<vmem>>, vector<1x8x128xf32>
    %6 = vector.shape_cast %5 : vector<1x8x128xf32> to vector<8x128xf32>
    %7 = vector.shape_cast %4 : vector<8x128xf32> to vector<1x8x128xf32>
    tpu.vector_store %arg2[%c1, %c0_3, %c0_4], %7 {strides = array<i32>} : memref<24x8x128xf32, #tpu.memory_space<vmem>>, vector<1x8x128xf32>,
    %cst_5 = arith.constant 0.000000e+00 : f32
    %8 = vector.broadcast %cst_5 : f32 to vector<8x128xf32>
    %c2 = arith.constant 2 : index
    %c0_6 = arith.constant 0 : index
    %c0_7 = arith.constant 0 : index
    %9 = vector.load %arg2[%c2, %c0_6, %c0_7] : memref<24x8x128xf32, #tpu.memory_space<vmem>>, vector<1x8x128xf32>
    %10 = vector.shape_cast %9 : vector<1x8x128xf32> to vector<8x128xf32>
    %11 = vector.shape_cast %8 : vector<8x128xf32> to vector<1x8x128xf32>
    tpu.vector_store %arg2[%c2, %c0_6, %c0_7], %11 {strides = array<i32>} : memref<24x8x128xf32, #tpu.memory_space<vmem>>, vector<1x8x128xf32>,
    %c0_8 = arith.constant 0 : index
    %c0_9 = arith.constant 0 : index
    %c0_10 = arith.constant 0 : index
    %12 = vector.load %arg1[%c0_8, %c0_9, %c0_10] : memref<32x8x128xf32, #tpu.memory_space<vmem>>, vector<1x8x128xf32>
    %13 = vector.shape_cast %12 : vector<1x8x128xf32> to vector<8x128xf32>
    %c1_11 = arith.constant 1 : index
    %c0_12 = arith.constant 0 : index
    %c0_13 = arith.constant 0 : index
    %14 = vector.load %arg1[%c1_11, %c0_12, %c0_13] : memref<32x8x128xf32, #tpu.memory_space<vmem>>, vector<1x8x128xf32>
    %15 = vector.shape_cast %14 : vector<1x8x128xf32> to vector<8x128xf32>
    %c2_14 = arith.constant 2 : index
    %c0_15 = arith.constant 0 : index
    %c0_16 = arith.constant 0 : index
    %16 = vector.load %arg1[%c2_14, %c0_15, %c0_16] : memref<32x8x128xf32, #tpu.memory_space<vmem>>, vector<1x8x128xf32>
    %17 = vector.shape_cast %16 : vector<1x8x128xf32> to vector<8x128xf32>
    %c3 = arith.constant 3 : index
    %c0_17 = arith.constant 0 : index
    %c0_18 = arith.constant 0 : index
    %18 = vector.load %arg1[%c3, %c0_17, %c0_18] : memref<32x8x128xf32, #tpu.memory_space<vmem>>, vector<1x8x128xf32>
    %19 = vector.shape_cast %18 : vector<1x8x128xf32> to vector<8x128xf32>
    %20 = arith.mulf %13, %13 : vector<8x128xf32>
    %21 = arith.mulf %15, %15 : vector<8x128xf32>
    %22 = arith.addf %20, %21 : vector<8x128xf32>
    %23 = arith.mulf %17, %17 : vector<8x128xf32>
    %24 = arith.addf %22, %23 : vector<8x128xf32>
    %25 = arith.mulf %19, %19 : vector<8x128xf32>
    %26 = arith.addf %24, %25 : vector<8x128xf32>
    %cst_19 = arith.constant 9.99999993E-9 : f32
    %27 = vector.broadcast %cst_19 : f32 to vector<8x128xf32>
    %28 = arith.addf %26, %27 : vector<8x128xf32>
    %29 = math.rsqrt %28 : vector<8x128xf32>
    %30 = arith.mulf %13, %29 : vector<8x128xf32>
    %31 = arith.mulf %15, %29 : vector<8x128xf32>
    %32 = arith.mulf %17, %29 : vector<8x128xf32>
    %33 = arith.mulf %19, %29 : vector<8x128xf32>
    %34 = arith.mulf %31, %31 : vector<8x128xf32>
    %35 = arith.mulf %32, %32 : vector<8x128xf32>
    %36 = arith.mulf %33, %33 : vector<8x128xf32>
    %37 = arith.mulf %31, %32 : vector<8x128xf32>
    %38 = arith.mulf %31, %33 : vector<8x128xf32>
    %39 = arith.mulf %32, %33 : vector<8x128xf32>
    %40 = arith.mulf %30, %31 : vector<8x128xf32>
    %41 = arith.mulf %30, %32 : vector<8x128xf32>
    %42 = arith.mulf %30, %33 : vector<8x128xf32>
    %43 = arith.addf %35, %36 : vector<8x128xf32>
    %cst_20 = arith.constant 2.000000e+00 : f32
    %44 = vector.broadcast %cst_20 : f32 to vector<8x128xf32>
    %45 = arith.mulf %44, %43 : vector<8x128xf32>
    %cst_21 = arith.constant 1.000000e+00 : f32
    %46 = vector.broadcast %cst_21 : f32 to vector<8x128xf32>
    %47 = arith.subf %46, %45 : vector<8x128xf32>
    %48 = arith.subf %37, %42 : vector<8x128xf32>
    %cst_22 = arith.constant 2.000000e+00 : f32
    %49 = vector.broadcast %cst_22 : f32 to vector<8x128xf32>
    %50 = arith.mulf %49, %48 : vector<8x128xf32>
    %51 = arith.addf %38, %41 : vector<8x128xf32>
    %cst_23 = arith.constant 2.000000e+00 : f32
    %52 = vector.broadcast %cst_23 : f32 to vector<8x128xf32>
    %53 = arith.mulf %52, %51 : vector<8x128xf32>
    %54 = arith.addf %37, %42 : vector<8x128xf32>
    %cst_24 = arith.constant 2.000000e+00 : f32
    %55 = vector.broadcast %cst_24 : f32 to vector<8x128xf32>
    %56 = arith.mulf %55, %54 : vector<8x128xf32>
    %57 = arith.addf %34, %36 : vector<8x128xf32>
    %cst_25 = arith.constant 2.000000e+00 : f32
    %58 = vector.broadcast %cst_25 : f32 to vector<8x128xf32>
    %59 = arith.mulf %58, %57 : vector<8x128xf32>
    %cst_26 = arith.constant 1.000000e+00 : f32
    %60 = vector.broadcast %cst_26 : f32 to vector<8x128xf32>
    %61 = arith.subf %60, %59 : vector<8x128xf32>
    %62 = arith.subf %39, %40 : vector<8x128xf32>
    %cst_27 = arith.constant 2.000000e+00 : f32
    %63 = vector.broadcast %cst_27 : f32 to vector<8x128xf32>
    %64 = arith.mulf %63, %62 : vector<8x128xf32>
    %65 = arith.subf %38, %41 : vector<8x128xf32>
    %cst_28 = arith.constant 2.000000e+00 : f32
    %66 = vector.broadcast %cst_28 : f32 to vector<8x128xf32>
    %67 = arith.mulf %66, %65 : vector<8x128xf32>
    %68 = arith.addf %39, %40 : vector<8x128xf32>
    %cst_29 = arith.constant 2.000000e+00 : f32
    %69 = vector.broadcast %cst_29 : f32 to vector<8x128xf32>
    %70 = arith.mulf %69, %68 : vector<8x128xf32>
    %71 = arith.addf %34, %35 : vector<8x128xf32>
    %cst_30 = arith.constant 2.000000e+00 : f32
    %72 = vector.broadcast %cst_30 : f32 to vector<8x128xf32>
    %73 = arith.mulf %72, %71 : vector<8x128xf32>
    %cst_31 = arith.constant 1.000000e+00 : f32
    %74 = vector.broadcast %cst_31 : f32 to vector<8x128xf32>
    %75 = arith.subf %74, %73 : vector<8x128xf32>
    %c3_32 = arith.constant 3 : index
    %c0_33 = arith.constant 0 : index
    %c0_34 = arith.constant 0 : index
    %76 = vector.load %arg2[%c3_32, %c0_33, %c0_34] : memref<24x8x128xf32, #tpu.memory_space<vmem>>, vector<1x8x128xf32>
    %77 = vector.shape_cast %76 : vector<1x8x128xf32> to vector<8x128xf32>
    %78 = vector.shape_cast %50 : vector<8x128xf32> to vector<1x8x128xf32>
    tpu.vector_store %arg2[%c3_32, %c0_33, %c0_34], %78 {strides = array<i32>} : memref<24x8x128xf32, #tpu.memory_space<vmem>>, vector<1x8x128xf32>,
    %c4 = arith.constant 4 : index
    %c0_35 = arith.constant 0 : index
    %c0_36 = arith.constant 0 : index
    %79 = vector.load %arg2[%c4, %c0_35, %c0_36] : memref<24x8x128xf32, #tpu.memory_space<vmem>>, vector<1x8x128xf32>
    %80 = vector.shape_cast %79 : vector<1x8x128xf32> to vector<8x128xf32>
    %81 = vector.shape_cast %61 : vector<8x128xf32> to vector<1x8x128xf32>
    tpu.vector_store %arg2[%c4, %c0_35, %c0_36], %81 {strides = array<i32>} : memref<24x8x128xf32, #tpu.memory_space<vmem>>, vector<1x8x128xf32>,
    %c5 = arith.constant 5 : index
    %c0_37 = arith.constant 0 : index
    %c0_38 = arith.constant 0 : index
    %82 = vector.load %arg2[%c5, %c0_37, %c0_38] : memref<24x8x128xf32, #tpu.memory_space<vmem>>, vector<1x8x128xf32>
    %83 = vector.shape_cast %82 : vector<1x8x128xf32> to vector<8x128xf32>
    %84 = vector.shape_cast %70 : vector<8x128xf32> to vector<1x8x128xf32>
    tpu.vector_store %arg2[%c5, %c0_37, %c0_38], %84 {strides = array<i32>} : memref<24x8x128xf32, #tpu.memory_space<vmem>>, vector<1x8x128xf32>,
    %c4_39 = arith.constant 4 : index
    %c0_40 = arith.constant 0 : index
    %c0_41 = arith.constant 0 : index
    %85 = vector.load %arg1[%c4_39, %c0_40, %c0_41] : memref<32x8x128xf32, #tpu.memory_space<vmem>>, vector<1x8x128xf32>
    %86 = vector.shape_cast %85 : vector<1x8x128xf32> to vector<8x128xf32>
    %c5_42 = arith.constant 5 : index
    %c0_43 = arith.constant 0 : index
    %c0_44 = arith.constant 0 : index
    %87 = vector.load %arg1[%c5_42, %c0_43, %c0_44] : memref<32x8x128xf32, #tpu.memory_space<vmem>>, vector<1x8x128xf32>
    %88 = vector.shape_cast %87 : vector<1x8x128xf32> to vector<8x128xf32>
    %c6 = arith.constant 6 : index
    %c0_45 = arith.constant 0 : index
    %c0_46 = arith.constant 0 : index
    %89 = vector.load %arg1[%c6, %c0_45, %c0_46] : memref<32x8x128xf32, #tpu.memory_space<vmem>>, vector<1x8x128xf32>
    %90 = vector.shape_cast %89 : vector<1x8x128xf32> to vector<8x128xf32>
    %c7 = arith.constant 7 : index
    %c0_47 = arith.constant 0 : index
    %c0_48 = arith.constant 0 : index
    %91 = vector.load %arg1[%c7, %c0_47, %c0_48] : memref<32x8x128xf32, #tpu.memory_space<vmem>>, vector<1x8x128xf32>
    %92 = vector.shape_cast %91 : vector<1x8x128xf32> to vector<8x128xf32>
    %93 = arith.mulf %86, %86 : vector<8x128xf32>
    %94 = arith.mulf %88, %88 : vector<8x128xf32>
    %95 = arith.addf %93, %94 : vector<8x128xf32>
    %96 = arith.mulf %90, %90 : vector<8x128xf32>
    %97 = arith.addf %95, %96 : vector<8x128xf32>
    %98 = arith.mulf %92, %92 : vector<8x128xf32>
    %99 = arith.addf %97, %98 : vector<8x128xf32>
    %cst_49 = arith.constant 9.99999993E-9 : f32
    %100 = vector.broadcast %cst_49 : f32 to vector<8x128xf32>
    %101 = arith.addf %99, %100 : vector<8x128xf32>
    %102 = math.rsqrt %101 : vector<8x128xf32>
    %103 = arith.mulf %86, %102 : vector<8x128xf32>
    %104 = arith.mulf %88, %102 : vector<8x128xf32>
    %105 = arith.mulf %90, %102 : vector<8x128xf32>
    %106 = arith.mulf %92, %102 : vector<8x128xf32>
    %107 = arith.mulf %104, %104 : vector<8x128xf32>
    %108 = arith.mulf %105, %105 : vector<8x128xf32>
    %109 = arith.mulf %106, %106 : vector<8x128xf32>
    %110 = arith.mulf %104, %105 : vector<8x128xf32>
    %111 = arith.mulf %104, %106 : vector<8x128xf32>
    %112 = arith.mulf %105, %106 : vector<8x128xf32>
    %113 = arith.mulf %103, %104 : vector<8x128xf32>
    %114 = arith.mulf %103, %105 : vector<8x128xf32>
    %115 = arith.mulf %103, %106 : vector<8x128xf32>
    %116 = arith.addf %108, %109 : vector<8x128xf32>
    %cst_50 = arith.constant 2.000000e+00 : f32
    %117 = vector.broadcast %cst_50 : f32 to vector<8x128xf32>
    %118 = arith.mulf %117, %116 : vector<8x128xf32>
    %cst_51 = arith.constant 1.000000e+00 : f32
    %119 = vector.broadcast %cst_51 : f32 to vector<8x128xf32>
    %120 = arith.subf %119, %118 : vector<8x128xf32>
    %121 = arith.subf %110, %115 : vector<8x128xf32>
    %cst_52 = arith.constant 2.000000e+00 : f32
    %122 = vector.broadcast %cst_52 : f32 to vector<8x128xf32>
    %123 = arith.mulf %122, %121 : vector<8x128xf32>
    %124 = arith.addf %111, %114 : vector<8x128xf32>
    %cst_53 = arith.constant 2.000000e+00 : f32
    %125 = vector.broadcast %cst_53 : f32 to vector<8x128xf32>
    %126 = arith.mulf %125, %124 : vector<8x128xf32>
    %127 = arith.addf %110, %115 : vector<8x128xf32>
    %cst_54 = arith.constant 2.000000e+00 : f32
    %128 = vector.broadcast %cst_54 : f32 to vector<8x128xf32>
    %129 = arith.mulf %128, %127 : vector<8x128xf32>
    %130 = arith.addf %107, %109 : vector<8x128xf32>
    %cst_55 = arith.constant 2.000000e+00 : f32
    %131 = vector.broadcast %cst_55 : f32 to vector<8x128xf32>
    %132 = arith.mulf %131, %130 : vector<8x128xf32>
    %cst_56 = arith.constant 1.000000e+00 : f32
    %133 = vector.broadcast %cst_56 : f32 to vector<8x128xf32>
    %134 = arith.subf %133, %132 : vector<8x128xf32>
    %135 = arith.subf %112, %113 : vector<8x128xf32>
    %cst_57 = arith.constant 2.000000e+00 : f32
    %136 = vector.broadcast %cst_57 : f32 to vector<8x128xf32>
    %137 = arith.mulf %136, %135 : vector<8x128xf32>
    %138 = arith.subf %111, %114 : vector<8x128xf32>
    %cst_58 = arith.constant 2.000000e+00 : f32
    %139 = vector.broadcast %cst_58 : f32 to vector<8x128xf32>
    %140 = arith.mulf %139, %138 : vector<8x128xf32>
    %141 = arith.addf %112, %113 : vector<8x128xf32>
    %cst_59 = arith.constant 2.000000e+00 : f32
    %142 = vector.broadcast %cst_59 : f32 to vector<8x128xf32>
    %143 = arith.mulf %142, %141 : vector<8x128xf32>
    %144 = arith.addf %107, %108 : vector<8x128xf32>
    %cst_60 = arith.constant 2.000000e+00 : f32
    %145 = vector.broadcast %cst_60 : f32 to vector<8x128xf32>
    %146 = arith.mulf %145, %144 : vector<8x128xf32>
    %cst_61 = arith.constant 1.000000e+00 : f32
    %147 = vector.broadcast %cst_61 : f32 to vector<8x128xf32>
    %148 = arith.subf %147, %146 : vector<8x128xf32>
    %149 = arith.mulf %47, %120 : vector<8x128xf32>
    %150 = arith.mulf %50, %129 : vector<8x128xf32>
    %151 = arith.addf %149, %150 : vector<8x128xf32>
    %152 = arith.mulf %53, %140 : vector<8x128xf32>
    %153 = arith.addf %151, %152 : vector<8x128xf32>
    %154 = arith.mulf %47, %123 : vector<8x128xf32>
    %155 = arith.mulf %50, %134 : vector<8x128xf32>
    %156 = arith.addf %154, %155 : vector<8x128xf32>
    %157 = arith.mulf %53, %143 : vector<8x128xf32>
    %158 = arith.addf %156, %157 : vector<8x128xf32>
    %159 = arith.mulf %47, %126 : vector<8x128xf32>
    %160 = arith.mulf %50, %137 : vector<8x128xf32>
    %161 = arith.addf %159, %160 : vector<8x128xf32>
    %162 = arith.mulf %53, %148 : vector<8x128xf32>
    %163 = arith.addf %161, %162 : vector<8x128xf32>
    %164 = arith.mulf %56, %120 : vector<8x128xf32>
    %165 = arith.mulf %61, %129 : vector<8x128xf32>
    %166 = arith.addf %164, %165 : vector<8x128xf32>
    %167 = arith.mulf %64, %140 : vector<8x128xf32>
    %168 = arith.addf %166, %167 : vector<8x128xf32>
    %169 = arith.mulf %56, %123 : vector<8x128xf32>
    %170 = arith.mulf %61, %134 : vector<8x128xf32>
    %171 = arith.addf %169, %170 : vector<8x128xf32>
    %172 = arith.mulf %64, %143 : vector<8x128xf32>
    %173 = arith.addf %171, %172 : vector<8x128xf32>
    %174 = arith.mulf %56, %126 : vector<8x128xf32>
    %175 = arith.mulf %61, %137 : vector<8x128xf32>
    %176 = arith.addf %174, %175 : vector<8x128xf32>
    %177 = arith.mulf %64, %148 : vector<8x128xf32>
    %178 = arith.addf %176, %177 : vector<8x128xf32>
    %179 = arith.mulf %67, %120 : vector<8x128xf32>
    %180 = arith.mulf %70, %129 : vector<8x128xf32>
    %181 = arith.addf %179, %180 : vector<8x128xf32>
    %182 = arith.mulf %75, %140 : vector<8x128xf32>
    %183 = arith.addf %181, %182 : vector<8x128xf32>
    %184 = arith.mulf %67, %123 : vector<8x128xf32>
    %185 = arith.mulf %70, %134 : vector<8x128xf32>
    %186 = arith.addf %184, %185 : vector<8x128xf32>
    %187 = arith.mulf %75, %143 : vector<8x128xf32>
    %188 = arith.addf %186, %187 : vector<8x128xf32>
    %189 = arith.mulf %67, %126 : vector<8x128xf32>
    %190 = arith.mulf %70, %137 : vector<8x128xf32>
    %191 = arith.addf %189, %190 : vector<8x128xf32>
    %192 = arith.mulf %75, %148 : vector<8x128xf32>
    %193 = arith.addf %191, %192 : vector<8x128xf32>
    %cst_62 = arith.constant 0.899999976 : f32
    %194 = vector.broadcast %cst_62 : f32 to vector<8x128xf32>
    %195 = arith.mulf %158, %194 : vector<8x128xf32>
    %196 = arith.addf %50, %195 : vector<8x128xf32>
    %cst_63 = arith.constant 1.000000e-01 : f32
    %197 = vector.broadcast %cst_63 : f32 to vector<8x128xf32>
    %198 = arith.mulf %163, %197 : vector<8x128xf32>
    %199 = arith.addf %196, %198 : vector<8x128xf32>
    %cst_64 = arith.constant 0.899999976 : f32
    %200 = vector.broadcast %cst_64 : f32 to vector<8x128xf32>
    %201 = arith.mulf %173, %200 : vector<8x128xf32>
    %202 = arith.addf %61, %201 : vector<8x128xf32>
    %cst_65 = arith.constant 1.000000e-01 : f32
    %203 = vector.broadcast %cst_65 : f32 to vector<8x128xf32>
    %204 = arith.mulf %178, %203 : vector<8x128xf32>
    %205 = arith.addf %202, %204 : vector<8x128xf32>
    %cst_66 = arith.constant 0.899999976 : f32
    %206 = vector.broadcast %cst_66 : f32 to vector<8x128xf32>
    %207 = arith.mulf %188, %206 : vector<8x128xf32>
    %208 = arith.addf %70, %207 : vector<8x128xf32>
    %cst_67 = arith.constant 1.000000e-01 : f32
    %209 = vector.broadcast %cst_67 : f32 to vector<8x128xf32>
    %210 = arith.mulf %193, %209 : vector<8x128xf32>
    %211 = arith.addf %208, %210 : vector<8x128xf32>
    %c6_68 = arith.constant 6 : index
    %c0_69 = arith.constant 0 : index
    %c0_70 = arith.constant 0 : index
    %212 = vector.load %arg2[%c6_68, %c0_69, %c0_70] : memref<24x8x128xf32, #tpu.memory_space<vmem>>, vector<1x8x128xf32>
    %213 = vector.shape_cast %212 : vector<1x8x128xf32> to vector<8x128xf32>
    %214 = vector.shape_cast %199 : vector<8x128xf32> to vector<1x8x128xf32>
    tpu.vector_store %arg2[%c6_68, %c0_69, %c0_70], %214 {strides = array<i32>} : memref<24x8x128xf32, #tpu.memory_space<vmem>>, vector<1x8x128xf32>,
    %c7_71 = arith.constant 7 : index
    %c0_72 = arith.constant 0 : index
    %c0_73 = arith.constant 0 : index
    %215 = vector.load %arg2[%c7_71, %c0_72, %c0_73] : memref<24x8x128xf32, #tpu.memory_space<vmem>>, vector<1x8x128xf32>
    %216 = vector.shape_cast %215 : vector<1x8x128xf32> to vector<8x128xf32>
    %217 = vector.shape_cast %205 : vector<8x128xf32> to vector<1x8x128xf32>
    tpu.vector_store %arg2[%c7_71, %c0_72, %c0_73], %217 {strides = array<i32>} : memref<24x8x128xf32, #tpu.memory_space<vmem>>, vector<1x8x128xf32>,
    %c8 = arith.constant 8 : index
    %c0_74 = arith.constant 0 : index
    %c0_75 = arith.constant 0 : index
    %218 = vector.load %arg2[%c8, %c0_74, %c0_75] : memref<24x8x128xf32, #tpu.memory_space<vmem>>, vector<1x8x128xf32>
    %219 = vector.shape_cast %218 : vector<1x8x128xf32> to vector<8x128xf32>
    %220 = vector.shape_cast %211 : vector<8x128xf32> to vector<1x8x128xf32>
    tpu.vector_store %arg2[%c8, %c0_74, %c0_75], %220 {strides = array<i32>} : memref<24x8x128xf32, #tpu.memory_space<vmem>>, vector<1x8x128xf32>,
    %c8_76 = arith.constant 8 : index
    %c0_77 = arith.constant 0 : index
    %c0_78 = arith.constant 0 : index
    %221 = vector.load %arg1[%c8_76, %c0_77, %c0_78] : memref<32x8x128xf32, #tpu.memory_space<vmem>>, vector<1x8x128xf32>
    %222 = vector.shape_cast %221 : vector<1x8x128xf32> to vector<8x128xf32>
    %c9 = arith.constant 9 : index
    %c0_79 = arith.constant 0 : index
    %c0_80 = arith.constant 0 : index
    %223 = vector.load %arg1[%c9, %c0_79, %c0_80] : memref<32x8x128xf32, #tpu.memory_space<vmem>>, vector<1x8x128xf32>
    %224 = vector.shape_cast %223 : vector<1x8x128xf32> to vector<8x128xf32>
    %c10 = arith.constant 10 : index
    %c0_81 = arith.constant 0 : index
    %c0_82 = arith.constant 0 : index
    %225 = vector.load %arg1[%c10, %c0_81, %c0_82] : memref<32x8x128xf32, #tpu.memory_space<vmem>>, vector<1x8x128xf32>
    %226 = vector.shape_cast %225 : vector<1x8x128xf32> to vector<8x128xf32>
    %c11 = arith.constant 11 : index
    %c0_83 = arith.constant 0 : index
    %c0_84 = arith.constant 0 : index
    %227 = vector.load %arg1[%c11, %c0_83, %c0_84] : memref<32x8x128xf32, #tpu.memory_space<vmem>>, vector<1x8x128xf32>
    %228 = vector.shape_cast %227 : vector<1x8x128xf32> to vector<8x128xf32>
    %229 = arith.mulf %222, %222 : vector<8x128xf32>
    %230 = arith.mulf %224, %224 : vector<8x128xf32>
    %231 = arith.addf %229, %230 : vector<8x128xf32>
    %232 = arith.mulf %226, %226 : vector<8x128xf32>
    %233 = arith.addf %231, %232 : vector<8x128xf32>
    %234 = arith.mulf %228, %228 : vector<8x128xf32>
    %235 = arith.addf %233, %234 : vector<8x128xf32>
    %cst_85 = arith.constant 9.99999993E-9 : f32
    %236 = vector.broadcast %cst_85 : f32 to vector<8x128xf32>
    %237 = arith.addf %235, %236 : vector<8x128xf32>
    %238 = math.rsqrt %237 : vector<8x128xf32>
    %239 = arith.mulf %222, %238 : vector<8x128xf32>
    %240 = arith.mulf %224, %238 : vector<8x128xf32>
    %241 = arith.mulf %226, %238 : vector<8x128xf32>
    %242 = arith.mulf %228, %238 : vector<8x128xf32>
    %243 = arith.mulf %240, %240 : vector<8x128xf32>
    %244 = arith.mulf %242, %242 : vector<8x128xf32>
    %245 = arith.mulf %240, %241 : vector<8x128xf32>
    %246 = arith.mulf %241, %242 : vector<8x128xf32>
    %247 = arith.mulf %239, %240 : vector<8x128xf32>
    %248 = arith.mulf %239, %242 : vector<8x128xf32>
    %249 = arith.subf %245, %248 : vector<8x128xf32>
    %cst_86 = arith.constant 2.000000e+00 : f32
    %250 = vector.broadcast %cst_86 : f32 to vector<8x128xf32>
    %251 = arith.mulf %250, %249 : vector<8x128xf32>
    %252 = arith.addf %243, %244 : vector<8x128xf32>
    %cst_87 = arith.constant 2.000000e+00 : f32
    %253 = vector.broadcast %cst_87 : f32 to vector<8x128xf32>
    %254 = arith.mulf %253, %252 : vector<8x128xf32>
    %cst_88 = arith.constant 1.000000e+00 : f32
    %255 = vector.broadcast %cst_88 : f32 to vector<8x128xf32>
    %256 = arith.subf %255, %254 : vector<8x128xf32>
    %257 = arith.addf %246, %247 : vector<8x128xf32>
    %cst_89 = arith.constant 2.000000e+00 : f32
    %258 = vector.broadcast %cst_89 : f32 to vector<8x128xf32>
    %259 = arith.mulf %258, %257 : vector<8x128xf32>
    %260 = arith.mulf %153, %251 : vector<8x128xf32>
    %261 = arith.mulf %158, %256 : vector<8x128xf32>
    %262 = arith.addf %260, %261 : vector<8x128xf32>
    %263 = arith.mulf %163, %259 : vector<8x128xf32>
    %264 = arith.addf %262, %263 : vector<8x128xf32>
    %265 = arith.mulf %168, %251 : vector<8x128xf32>
    %266 = arith.mulf %173, %256 : vector<8x128xf32>
    %267 = arith.addf %265, %266 : vector<8x128xf32>
    %268 = arith.mulf %178, %259 : vector<8x128xf32>
    %269 = arith.addf %267, %268 : vector<8x128xf32>
    %270 = arith.mulf %183, %251 : vector<8x128xf32>
    %271 = arith.mulf %188, %256 : vector<8x128xf32>
    %272 = arith.addf %270, %271 : vector<8x128xf32>
    %273 = arith.mulf %193, %259 : vector<8x128xf32>
    %274 = arith.addf %272, %273 : vector<8x128xf32>
    %cst_90 = arith.constant 8.000000e-01 : f32
    %275 = vector.broadcast %cst_90 : f32 to vector<8x128xf32>
    %276 = arith.mulf %264, %275 : vector<8x128xf32>
    %277 = arith.addf %199, %276 : vector<8x128xf32>
    %cst_91 = arith.constant 8.000000e-01 : f32
    %278 = vector.broadcast %cst_91 : f32 to vector<8x128xf32>
    %279 = arith.mulf %269, %278 : vector<8x128xf32>
    %280 = arith.addf %205, %279 : vector<8x128xf32>
    %cst_92 = arith.constant 8.000000e-01 : f32
    %281 = vector.broadcast %cst_92 : f32 to vector<8x128xf32>
    %282 = arith.mulf %274, %281 : vector<8x128xf32>
    %283 = arith.addf %211, %282 : vector<8x128xf32>
    %c9_93 = arith.constant 9 : index
    %c0_94 = arith.constant 0 : index
    %c0_95 = arith.constant 0 : index
    %284 = vector.load %arg2[%c9_93, %c0_94, %c0_95] : memref<24x8x128xf32, #tpu.memory_space<vmem>>, vector<1x8x128xf32>
    %285 = vector.shape_cast %284 : vector<1x8x128xf32> to vector<8x128xf32>
    %286 = vector.shape_cast %277 : vector<8x128xf32> to vector<1x8x128xf32>
    tpu.vector_store %arg2[%c9_93, %c0_94, %c0_95], %286 {strides = array<i32>} : memref<24x8x128xf32, #tpu.memory_space<vmem>>, vector<1x8x128xf32>,
    %c10_96 = arith.constant 10 : index
    %c0_97 = arith.constant 0 : index
    %c0_98 = arith.constant 0 : index
    %287 = vector.load %arg2[%c10_96, %c0_97, %c0_98] : memref<24x8x128xf32, #tpu.memory_space<vmem>>, vector<1x8x128xf32>
    %288 = vector.shape_cast %287 : vector<1x8x128xf32> to vector<8x128xf32>
    %289 = vector.shape_cast %280 : vector<8x128xf32> to vector<1x8x128xf32>
    tpu.vector_store %arg2[%c10_96, %c0_97, %c0_98], %289 {strides = array<i32>} : memref<24x8x128xf32, #tpu.memory_space<vmem>>, vector<1x8x128xf32>,
    %c11_99 = arith.constant 11 : index
    %c0_100 = arith.constant 0 : index
    %c0_101 = arith.constant 0 : index
    %290 = vector.load %arg2[%c11_99, %c0_100, %c0_101] : memref<24x8x128xf32, #tpu.memory_space<vmem>>, vector<1x8x128xf32>
    %291 = vector.shape_cast %290 : vector<1x8x128xf32> to vector<8x128xf32>
    %292 = vector.shape_cast %283 : vector<8x128xf32> to vector<1x8x128xf32>
    tpu.vector_store %arg2[%c11_99, %c0_100, %c0_101], %292 {strides = array<i32>} : memref<24x8x128xf32, #tpu.memory_space<vmem>>, vector<1x8x128xf32>,
    %cst_102 = arith.constant 5.000000e-01 : f32
    %293 = vector.broadcast %cst_102 : f32 to vector<8x128xf32>
    %294 = arith.mulf %153, %293 : vector<8x128xf32>
    %295 = arith.addf %50, %294 : vector<8x128xf32>
    %cst_103 = arith.constant 0.699999988 : f32
    %296 = vector.broadcast %cst_103 : f32 to vector<8x128xf32>
    %297 = arith.mulf %158, %296 : vector<8x128xf32>
    %298 = arith.addf %295, %297 : vector<8x128xf32>
    %cst_104 = arith.constant 5.000000e-01 : f32
    %299 = vector.broadcast %cst_104 : f32 to vector<8x128xf32>
    %300 = arith.mulf %168, %299 : vector<8x128xf32>
    %301 = arith.addf %61, %300 : vector<8x128xf32>
    %cst_105 = arith.constant 0.699999988 : f32
    %302 = vector.broadcast %cst_105 : f32 to vector<8x128xf32>
    %303 = arith.mulf %173, %302 : vector<8x128xf32>
    %304 = arith.addf %301, %303 : vector<8x128xf32>
    %cst_106 = arith.constant 5.000000e-01 : f32
    %305 = vector.broadcast %cst_106 : f32 to vector<8x128xf32>
    %306 = arith.mulf %183, %305 : vector<8x128xf32>
    %307 = arith.addf %70, %306 : vector<8x128xf32>
    %cst_107 = arith.constant 0.699999988 : f32
    %308 = vector.broadcast %cst_107 : f32 to vector<8x128xf32>
    %309 = arith.mulf %188, %308 : vector<8x128xf32>
    %310 = arith.addf %307, %309 : vector<8x128xf32>
    %c12 = arith.constant 12 : index
    %c0_108 = arith.constant 0 : index
    %c0_109 = arith.constant 0 : index
    %311 = vector.load %arg2[%c12, %c0_108, %c0_109] : memref<24x8x128xf32, #tpu.memory_space<vmem>>, vector<1x8x128xf32>
    %312 = vector.shape_cast %311 : vector<1x8x128xf32> to vector<8x128xf32>
    %313 = vector.shape_cast %298 : vector<8x128xf32> to vector<1x8x128xf32>
    tpu.vector_store %arg2[%c12, %c0_108, %c0_109], %313 {strides = array<i32>} : memref<24x8x128xf32, #tpu.memory_space<vmem>>, vector<1x8x128xf32>,
    %c13 = arith.constant 13 : index
    %c0_110 = arith.constant 0 : index
    %c0_111 = arith.constant 0 : index
    %314 = vector.load %arg2[%c13, %c0_110, %c0_111] : memref<24x8x128xf32, #tpu.memory_space<vmem>>, vector<1x8x128xf32>
    %315 = vector.shape_cast %314 : vector<1x8x128xf32> to vector<8x128xf32>
    %316 = vector.shape_cast %304 : vector<8x128xf32> to vector<1x8x128xf32>
    tpu.vector_store %arg2[%c13, %c0_110, %c0_111], %316 {strides = array<i32>} : memref<24x8x128xf32, #tpu.memory_space<vmem>>, vector<1x8x128xf32>,
    %c14 = arith.constant 14 : index
    %c0_112 = arith.constant 0 : index
    %c0_113 = arith.constant 0 : index
    %317 = vector.load %arg2[%c14, %c0_112, %c0_113] : memref<24x8x128xf32, #tpu.memory_space<vmem>>, vector<1x8x128xf32>
    %318 = vector.shape_cast %317 : vector<1x8x128xf32> to vector<8x128xf32>
    %319 = vector.shape_cast %310 : vector<8x128xf32> to vector<1x8x128xf32>
    tpu.vector_store %arg2[%c14, %c0_112, %c0_113], %319 {strides = array<i32>} : memref<24x8x128xf32, #tpu.memory_space<vmem>>, vector<1x8x128xf32>,
    %c16 = arith.constant 16 : index
    %c0_114 = arith.constant 0 : index
    %c0_115 = arith.constant 0 : index
    %320 = vector.load %arg1[%c16, %c0_114, %c0_115] : memref<32x8x128xf32, #tpu.memory_space<vmem>>, vector<1x8x128xf32>
    %321 = vector.shape_cast %320 : vector<1x8x128xf32> to vector<8x128xf32>
    %c17 = arith.constant 17 : index
    %c0_116 = arith.constant 0 : index
    %c0_117 = arith.constant 0 : index
    %322 = vector.load %arg1[%c17, %c0_116, %c0_117] : memref<32x8x128xf32, #tpu.memory_space<vmem>>, vector<1x8x128xf32>
    %323 = vector.shape_cast %322 : vector<1x8x128xf32> to vector<8x128xf32>
    %c18 = arith.constant 18 : index
    %c0_118 = arith.constant 0 : index
    %c0_119 = arith.constant 0 : index
    %324 = vector.load %arg1[%c18, %c0_118, %c0_119] : memref<32x8x128xf32, #tpu.memory_space<vmem>>, vector<1x8x128xf32>
    %325 = vector.shape_cast %324 : vector<1x8x128xf32> to vector<8x128xf32>
    %c19 = arith.constant 19 : index
    %c0_120 = arith.constant 0 : index
    %c0_121 = arith.constant 0 : index
    %326 = vector.load %arg1[%c19, %c0_120, %c0_121] : memref<32x8x128xf32, #tpu.memory_space<vmem>>, vector<1x8x128xf32>
    %327 = vector.shape_cast %326 : vector<1x8x128xf32> to vector<8x128xf32>
    %328 = arith.mulf %321, %321 : vector<8x128xf32>
    %329 = arith.mulf %323, %323 : vector<8x128xf32>
    %330 = arith.addf %328, %329 : vector<8x128xf32>
    %331 = arith.mulf %325, %325 : vector<8x128xf32>
    %332 = arith.addf %330, %331 : vector<8x128xf32>
    %333 = arith.mulf %327, %327 : vector<8x128xf32>
    %334 = arith.addf %332, %333 : vector<8x128xf32>
    %cst_122 = arith.constant 9.99999993E-9 : f32
    %335 = vector.broadcast %cst_122 : f32 to vector<8x128xf32>
    %336 = arith.addf %334, %335 : vector<8x128xf32>
    %337 = math.rsqrt %336 : vector<8x128xf32>
    %338 = arith.mulf %321, %337 : vector<8x128xf32>
    %339 = arith.mulf %323, %337 : vector<8x128xf32>
    %340 = arith.mulf %325, %337 : vector<8x128xf32>
    %341 = arith.mulf %327, %337 : vector<8x128xf32>
    %342 = arith.mulf %340, %340 : vector<8x128xf32>
    %343 = arith.mulf %341, %341 : vector<8x128xf32>
    %344 = arith.mulf %339, %340 : vector<8x128xf32>
    %345 = arith.mulf %339, %341 : vector<8x128xf32>
    %346 = arith.mulf %338, %340 : vector<8x128xf32>
    %347 = arith.mulf %338, %341 : vector<8x128xf32>
    %348 = arith.addf %342, %343 : vector<8x128xf32>
    %cst_123 = arith.constant 2.000000e+00 : f32
    %349 = vector.broadcast %cst_123 : f32 to vector<8x128xf32>
    %350 = arith.mulf %349, %348 : vector<8x128xf32>
    %cst_124 = arith.constant 1.000000e+00 : f32
    %351 = vector.broadcast %cst_124 : f32 to vector<8x128xf32>
    %352 = arith.subf %351, %350 : vector<8x128xf32>
    %353 = arith.addf %344, %347 : vector<8x128xf32>
    %cst_125 = arith.constant 2.000000e+00 : f32
    %354 = vector.broadcast %cst_125 : f32 to vector<8x128xf32>
    %355 = arith.mulf %354, %353 : vector<8x128xf32>
    %356 = arith.subf %345, %346 : vector<8x128xf32>
    %cst_126 = arith.constant 2.000000e+00 : f32
    %357 = vector.broadcast %cst_126 : f32 to vector<8x128xf32>
    %358 = arith.mulf %357, %356 : vector<8x128xf32>
    %359 = arith.mulf %153, %352 : vector<8x128xf32>
    %360 = arith.mulf %158, %355 : vector<8x128xf32>
    %361 = arith.addf %359, %360 : vector<8x128xf32>
    %362 = arith.mulf %163, %358 : vector<8x128xf32>
    %363 = arith.addf %361, %362 : vector<8x128xf32>
    %364 = arith.mulf %168, %352 : vector<8x128xf32>
    %365 = arith.mulf %173, %355 : vector<8x128xf32>
    %366 = arith.addf %364, %365 : vector<8x128xf32>
    %367 = arith.mulf %178, %358 : vector<8x128xf32>
    %368 = arith.addf %366, %367 : vector<8x128xf32>
    %369 = arith.mulf %183, %352 : vector<8x128xf32>
    %370 = arith.mulf %188, %355 : vector<8x128xf32>
    %371 = arith.addf %369, %370 : vector<8x128xf32>
    %372 = arith.mulf %193, %358 : vector<8x128xf32>
    %373 = arith.addf %371, %372 : vector<8x128xf32>
    %cst_127 = arith.constant 6.000000e-01 : f32
    %374 = vector.broadcast %cst_127 : f32 to vector<8x128xf32>
    %375 = arith.mulf %363, %374 : vector<8x128xf32>
    %376 = arith.addf %298, %375 : vector<8x128xf32>
    %cst_128 = arith.constant 6.000000e-01 : f32
    %377 = vector.broadcast %cst_128 : f32 to vector<8x128xf32>
    %378 = arith.mulf %368, %377 : vector<8x128xf32>
    %379 = arith.addf %304, %378 : vector<8x128xf32>
    %cst_129 = arith.constant 6.000000e-01 : f32
    %380 = vector.broadcast %cst_129 : f32 to vector<8x128xf32>
    %381 = arith.mulf %373, %380 : vector<8x128xf32>
    %382 = arith.addf %310, %381 : vector<8x128xf32>
    %c15 = arith.constant 15 : index
    %c0_130 = arith.constant 0 : index
    %c0_131 = arith.constant 0 : index
    %383 = vector.load %arg2[%c15, %c0_130, %c0_131] : memref<24x8x128xf32, #tpu.memory_space<vmem>>, vector<1x8x128xf32>
    %384 = vector.shape_cast %383 : vector<1x8x128xf32> to vector<8x128xf32>
    %385 = vector.shape_cast %376 : vector<8x128xf32> to vector<1x8x128xf32>
    tpu.vector_store %arg2[%c15, %c0_130, %c0_131], %385 {strides = array<i32>} : memref<24x8x128xf32, #tpu.memory_space<vmem>>, vector<1x8x128xf32>,
    %c16_132 = arith.constant 16 : index
    %c0_133 = arith.constant 0 : index
    %c0_134 = arith.constant 0 : index
    %386 = vector.load %arg2[%c16_132, %c0_133, %c0_134] : memref<24x8x128xf32, #tpu.memory_space<vmem>>, vector<1x8x128xf32>
    %387 = vector.shape_cast %386 : vector<1x8x128xf32> to vector<8x128xf32>
    %388 = vector.shape_cast %379 : vector<8x128xf32> to vector<1x8x128xf32>
    tpu.vector_store %arg2[%c16_132, %c0_133, %c0_134], %388 {strides = array<i32>} : memref<24x8x128xf32, #tpu.memory_space<vmem>>, vector<1x8x128xf32>,
    %c17_135 = arith.constant 17 : index
    %c0_136 = arith.constant 0 : index
    %c0_137 = arith.constant 0 : index
    %389 = vector.load %arg2[%c17_135, %c0_136, %c0_137] : memref<24x8x128xf32, #tpu.memory_space<vmem>>, vector<1x8x128xf32>
    %390 = vector.shape_cast %389 : vector<1x8x128xf32> to vector<8x128xf32>
    %391 = vector.shape_cast %382 : vector<8x128xf32> to vector<1x8x128xf32>
    tpu.vector_store %arg2[%c17_135, %c0_136, %c0_137], %391 {strides = array<i32>} : memref<24x8x128xf32, #tpu.memory_space<vmem>>, vector<1x8x128xf32>,
    %cst_138 = arith.constant -5.000000e-01 : f32
    %392 = vector.broadcast %cst_138 : f32 to vector<8x128xf32>
    %393 = arith.mulf %153, %392 : vector<8x128xf32>
    %394 = arith.addf %50, %393 : vector<8x128xf32>
    %cst_139 = arith.constant 0.699999988 : f32
    %395 = vector.broadcast %cst_139 : f32 to vector<8x128xf32>
    %396 = arith.mulf %158, %395 : vector<8x128xf32>
    %397 = arith.addf %394, %396 : vector<8x128xf32>
    %cst_140 = arith.constant -5.000000e-01 : f32
    %398 = vector.broadcast %cst_140 : f32 to vector<8x128xf32>
    %399 = arith.mulf %168, %398 : vector<8x128xf32>
    %400 = arith.addf %61, %399 : vector<8x128xf32>
    %cst_141 = arith.constant 0.699999988 : f32
    %401 = vector.broadcast %cst_141 : f32 to vector<8x128xf32>
    %402 = arith.mulf %173, %401 : vector<8x128xf32>
    %403 = arith.addf %400, %402 : vector<8x128xf32>
    %cst_142 = arith.constant -5.000000e-01 : f32
    %404 = vector.broadcast %cst_142 : f32 to vector<8x128xf32>
    %405 = arith.mulf %183, %404 : vector<8x128xf32>
    %406 = arith.addf %70, %405 : vector<8x128xf32>
    %cst_143 = arith.constant 0.699999988 : f32
    %407 = vector.broadcast %cst_143 : f32 to vector<8x128xf32>
    %408 = arith.mulf %188, %407 : vector<8x128xf32>
    %409 = arith.addf %406, %408 : vector<8x128xf32>
    %c18_144 = arith.constant 18 : index
    %c0_145 = arith.constant 0 : index
    %c0_146 = arith.constant 0 : index
    %410 = vector.load %arg2[%c18_144, %c0_145, %c0_146] : memref<24x8x128xf32, #tpu.memory_space<vmem>>, vector<1x8x128xf32>
    %411 = vector.shape_cast %410 : vector<1x8x128xf32> to vector<8x128xf32>
    %412 = vector.shape_cast %397 : vector<8x128xf32> to vector<1x8x128xf32>
    tpu.vector_store %arg2[%c18_144, %c0_145, %c0_146], %412 {strides = array<i32>} : memref<24x8x128xf32, #tpu.memory_space<vmem>>, vector<1x8x128xf32>,
    %c19_147 = arith.constant 19 : index
    %c0_148 = arith.constant 0 : index
    %c0_149 = arith.constant 0 : index
    %413 = vector.load %arg2[%c19_147, %c0_148, %c0_149] : memref<24x8x128xf32, #tpu.memory_space<vmem>>, vector<1x8x128xf32>
    %414 = vector.shape_cast %413 : vector<1x8x128xf32> to vector<8x128xf32>
    %415 = vector.shape_cast %403 : vector<8x128xf32> to vector<1x8x128xf32>
    tpu.vector_store %arg2[%c19_147, %c0_148, %c0_149], %415 {strides = array<i32>} : memref<24x8x128xf32, #tpu.memory_space<vmem>>, vector<1x8x128xf32>,
    %c20 = arith.constant 20 : index
    %c0_150 = arith.constant 0 : index
    %c0_151 = arith.constant 0 : index
    %416 = vector.load %arg2[%c20, %c0_150, %c0_151] : memref<24x8x128xf32, #tpu.memory_space<vmem>>, vector<1x8x128xf32>
    %417 = vector.shape_cast %416 : vector<1x8x128xf32> to vector<8x128xf32>
    %418 = vector.shape_cast %409 : vector<8x128xf32> to vector<1x8x128xf32>
    tpu.vector_store %arg2[%c20, %c0_150, %c0_151], %418 {strides = array<i32>} : memref<24x8x128xf32, #tpu.memory_space<vmem>>, vector<1x8x128xf32>,
    %c24 = arith.constant 24 : index
    %c0_152 = arith.constant 0 : index
    %c0_153 = arith.constant 0 : index
    %419 = vector.load %arg1[%c24, %c0_152, %c0_153] : memref<32x8x128xf32, #tpu.memory_space<vmem>>, vector<1x8x128xf32>
    %420 = vector.shape_cast %419 : vector<1x8x128xf32> to vector<8x128xf32>
    %c25 = arith.constant 25 : index
    %c0_154 = arith.constant 0 : index
    %c0_155 = arith.constant 0 : index
    %421 = vector.load %arg1[%c25, %c0_154, %c0_155] : memref<32x8x128xf32, #tpu.memory_space<vmem>>, vector<1x8x128xf32>
    %422 = vector.shape_cast %421 : vector<1x8x128xf32> to vector<8x128xf32>
    %c26 = arith.constant 26 : index
    %c0_156 = arith.constant 0 : index
    %c0_157 = arith.constant 0 : index
    %423 = vector.load %arg1[%c26, %c0_156, %c0_157] : memref<32x8x128xf32, #tpu.memory_space<vmem>>, vector<1x8x128xf32>
    %424 = vector.shape_cast %423 : vector<1x8x128xf32> to vector<8x128xf32>
    %c27 = arith.constant 27 : index
    %c0_158 = arith.constant 0 : index
    %c0_159 = arith.constant 0 : index
    %425 = vector.load %arg1[%c27, %c0_158, %c0_159] : memref<32x8x128xf32, #tpu.memory_space<vmem>>, vector<1x8x128xf32>
    %426 = vector.shape_cast %425 : vector<1x8x128xf32> to vector<8x128xf32>
    %427 = arith.mulf %420, %420 : vector<8x128xf32>
    %428 = arith.mulf %422, %422 : vector<8x128xf32>
    %429 = arith.addf %427, %428 : vector<8x128xf32>
    %430 = arith.mulf %424, %424 : vector<8x128xf32>
    %431 = arith.addf %429, %430 : vector<8x128xf32>
    %432 = arith.mulf %426, %426 : vector<8x128xf32>
    %433 = arith.addf %431, %432 : vector<8x128xf32>
    %cst_160 = arith.constant 9.99999993E-9 : f32
    %434 = vector.broadcast %cst_160 : f32 to vector<8x128xf32>
    %435 = arith.addf %433, %434 : vector<8x128xf32>
    %436 = math.rsqrt %435 : vector<8x128xf32>
    %437 = arith.mulf %420, %436 : vector<8x128xf32>
    %438 = arith.mulf %422, %436 : vector<8x128xf32>
    %439 = arith.mulf %424, %436 : vector<8x128xf32>
    %440 = arith.mulf %426, %436 : vector<8x128xf32>
    %441 = arith.mulf %439, %439 : vector<8x128xf32>
    %442 = arith.mulf %440, %440 : vector<8x128xf32>
    %443 = arith.mulf %438, %439 : vector<8x128xf32>
    %444 = arith.mulf %438, %440 : vector<8x128xf32>
    %445 = arith.mulf %437, %439 : vector<8x128xf32>
    %446 = arith.mulf %437, %440 : vector<8x128xf32>
    %447 = arith.addf %441, %442 : vector<8x128xf32>
    %cst_161 = arith.constant 2.000000e+00 : f32
    %448 = vector.broadcast %cst_161 : f32 to vector<8x128xf32>
    %449 = arith.mulf %448, %447 : vector<8x128xf32>
    %cst_162 = arith.constant 1.000000e+00 : f32
    %450 = vector.broadcast %cst_162 : f32 to vector<8x128xf32>
    %451 = arith.subf %450, %449 : vector<8x128xf32>
    %452 = arith.addf %443, %446 : vector<8x128xf32>
    %cst_163 = arith.constant 2.000000e+00 : f32
    %453 = vector.broadcast %cst_163 : f32 to vector<8x128xf32>
    %454 = arith.mulf %453, %452 : vector<8x128xf32>
    %455 = arith.subf %444, %445 : vector<8x128xf32>
    %cst_164 = arith.constant 2.000000e+00 : f32
    %456 = vector.broadcast %cst_164 : f32 to vector<8x128xf32>
    %457 = arith.mulf %456, %455 : vector<8x128xf32>
    %458 = arith.mulf %153, %451 : vector<8x128xf32>
    %459 = arith.mulf %158, %454 : vector<8x128xf32>
    %460 = arith.addf %458, %459 : vector<8x128xf32>
    %461 = arith.mulf %163, %457 : vector<8x128xf32>
    %462 = arith.addf %460, %461 : vector<8x128xf32>
    %463 = arith.mulf %168, %451 : vector<8x128xf32>
    %464 = arith.mulf %173, %454 : vector<8x128xf32>
    %465 = arith.addf %463, %464 : vector<8x128xf32>
    %466 = arith.mulf %178, %457 : vector<8x128xf32>
    %467 = arith.addf %465, %466 : vector<8x128xf32>
    %468 = arith.mulf %183, %451 : vector<8x128xf32>
    %469 = arith.mulf %188, %454 : vector<8x128xf32>
    %470 = arith.addf %468, %469 : vector<8x128xf32>
    %471 = arith.mulf %193, %457 : vector<8x128xf32>
    %472 = arith.addf %470, %471 : vector<8x128xf32>
    %cst_165 = arith.constant -6.000000e-01 : f32
    %473 = vector.broadcast %cst_165 : f32 to vector<8x128xf32>
    %474 = arith.mulf %462, %473 : vector<8x128xf32>
    %475 = arith.addf %397, %474 : vector<8x128xf32>
    %cst_166 = arith.constant -6.000000e-01 : f32
    %476 = vector.broadcast %cst_166 : f32 to vector<8x128xf32>
    %477 = arith.mulf %467, %476 : vector<8x128xf32>
    %478 = arith.addf %403, %477 : vector<8x128xf32>
    %cst_167 = arith.constant -6.000000e-01 : f32
    %479 = vector.broadcast %cst_167 : f32 to vector<8x128xf32>
    %480 = arith.mulf %472, %479 : vector<8x128xf32>
    %481 = arith.addf %409, %480 : vector<8x128xf32>
    %c21 = arith.constant 21 : index
    %c0_168 = arith.constant 0 : index
    %c0_169 = arith.constant 0 : index
    %482 = vector.load %arg2[%c21, %c0_168, %c0_169] : memref<24x8x128xf32, #tpu.memory_space<vmem>>, vector<1x8x128xf32>
    %483 = vector.shape_cast %482 : vector<1x8x128xf32> to vector<8x128xf32>
    %484 = vector.shape_cast %475 : vector<8x128xf32> to vector<1x8x128xf32>
    tpu.vector_store %arg2[%c21, %c0_168, %c0_169], %484 {strides = array<i32>} : memref<24x8x128xf32, #tpu.memory_space<vmem>>, vector<1x8x128xf32>,
    %c22 = arith.constant 22 : index
    %c0_170 = arith.constant 0 : index
    %c0_171 = arith.constant 0 : index
    %485 = vector.load %arg2[%c22, %c0_170, %c0_171] : memref<24x8x128xf32, #tpu.memory_space<vmem>>, vector<1x8x128xf32>
    %486 = vector.shape_cast %485 : vector<1x8x128xf32> to vector<8x128xf32>
    %487 = vector.shape_cast %478 : vector<8x128xf32> to vector<1x8x128xf32>
    tpu.vector_store %arg2[%c22, %c0_170, %c0_171], %487 {strides = array<i32>} : memref<24x8x128xf32, #tpu.memory_space<vmem>>, vector<1x8x128xf32>,
    %c23 = arith.constant 23 : index
    %c0_172 = arith.constant 0 : index
    %c0_173 = arith.constant 0 : index
    %488 = vector.load %arg2[%c23, %c0_172, %c0_173] : memref<24x8x128xf32, #tpu.memory_space<vmem>>, vector<1x8x128xf32>
    %489 = vector.shape_cast %488 : vector<1x8x128xf32> to vector<8x128xf32>
    %490 = vector.shape_cast %481 : vector<8x128xf32> to vector<1x8x128xf32>
    tpu.vector_store %arg2[%c23, %c0_172, %c0_173], %490 {strides = array<i32>} : memref<24x8x128xf32, #tpu.memory_space<vmem>>, vector<1x8x128xf32>,
    return
  }
  func.func @transform_0(%arg0: i32) -> (i32, i32, i32) {
    %c0_i32 = arith.constant 0 : i32
    %c0_i32_0 = arith.constant 0 : i32
    %c0_i32_1 = arith.constant 0 : i32
    return %c0_i32, %arg0, %c0_i32_0 : i32, i32, i32
  }
  func.func @transform_1(%arg0: i32) -> (i32, i32, i32) {
    %c0_i32 = arith.constant 0 : i32
    %c0_i32_0 = arith.constant 0 : i32
    %c0_i32_1 = arith.constant 0 : i32
    return %c0_i32, %arg0, %c0_i32_0 : i32, i32, i32
  }
}

</mosaic_0001>

<llo_original>
// kernel: skeleton_forward.1
$region0: #{skeleton_forward.1}
  #allocation0 [shape = 'u32[]', space=smem, size = 0x4, offset = 0x4, fixed_abs, tag = 'smem constant byte address 0x4 - core index']
  #allocation1 [shape = 'u32[144,128]{1,0:T(1,128)}', space=vmem, size = 0x12000, scoped, tag = 'internal scratch']
  %s0 = inlined_call_operand.vmem [shape: f32[32,8,128], index: 0, kind: input, shape index: {}]
  %s1 = inlined_call_operand.vmem [shape: f32[24,8,128], index: 1, kind: output, shape index: {}]
  %s2 = sld [smem:[#allocation0]]
  $region14: #{skeleton_forward.1} parent=0
    _
  %s4 = ssub.s32 1, %s2
  %s5 = scalar_select 0, %s4, %s2
  // Predicated region
  $region2: #{skeleton_forward.1} parent=0 // pred_check
    _
  $region3: #{skeleton_forward.1} parent=0 // pred_check_branch
    %7 = sbr.rel (0) target = $region5
  $region4: #{skeleton_forward.1} parent=0 // pred_region
    _
  $region5: #{skeleton_forward.1} parent=0 // pred_fallthru
    _
  %8 = vst [vmem:[%s1] sm:$0xff] 0.0
  %s9 = scalar_lea.vmem %s1, 8
  %10 = vst [vmem:[%s9] sm:$0xff] 0.0
  %s11 = scalar_lea.vmem %s1, 16
  %12 = vst [vmem:[%s11] sm:$0xff] 0.0
  %v13 = vld [vmem:[%s0] sm:$0xff]
  %s14 = scalar_lea.vmem %s0, 8
  %v15 = vld [vmem:[%s14] sm:$0xff]
  %s16 = scalar_lea.vmem %s0, 16
  %v17 = vld [vmem:[%s16] sm:$0xff]
  %s18 = scalar_lea.vmem %s0, 24
  %v19 = vld [vmem:[%s18] sm:$0xff]
  %v20 = vmul.f32 %v13, %v13
  %v21 = vmul.f32 %v15, %v15
  %v22 = vadd.f32 %v20, %v21
  %v23 = vmul.f32 %v17, %v17
  %v24 = vadd.f32 %v22, %v23
  %v25 = vmul.f32 %v19, %v19
  %v26 = vadd.f32 %v24, %v25
  %v27 = vadd.f32 %v26, 1e-08
  %v28 = vrsqrt.pop %v27
  %v29 = vmul.f32 %v13, %v28
  %v30 = vmul.f32 %v15, %v28
  %v31 = vmul.f32 %v17, %v28
  %v32 = vmul.f32 %v19, %v28
  %v33 = vmul.f32 %v30, %v30
  %v34 = vmul.f32 %v31, %v31
  %v35 = vmul.f32 %v32, %v32
  %v36 = vmul.f32 %v30, %v31
  %v37 = vmul.f32 %v30, %v32
  %v38 = vmul.f32 %v31, %v32
  %v39 = vmul.f32 %v29, %v30
  %v40 = vmul.f32 %v29, %v31
  %v41 = vmul.f32 %v29, %v32
  %v42 = vadd.f32 %v34, %v35
  %v43 = vmul.f32 %v42, 2.0
  %v44 = vsub.f32 1.0, %v43
  %v45 = vsub.f32 %v36, %v41
  %v46 = vmul.f32 %v45, 2.0
  %v47 = vadd.f32 %v37, %v40
  %v48 = vmul.f32 %v47, 2.0
  %v49 = vadd.f32 %v36, %v41
  %v50 = vmul.f32 %v49, 2.0
  %v51 = vadd.f32 %v33, %v35
  %v52 = vmul.f32 %v51, 2.0
  %v53 = vsub.f32 1.0, %v52
  %v54 = vsub.f32 %v38, %v39
  %v55 = vmul.f32 %v54, 2.0
  %v56 = vsub.f32 %v37, %v40
  %v57 = vmul.f32 %v56, 2.0
  %v58 = vadd.f32 %v38, %v39
  %v59 = vmul.f32 %v58, 2.0
  %v60 = vadd.f32 %v33, %v34
  %v61 = vmul.f32 %v60, 2.0
  %v62 = vsub.f32 1.0, %v61
  %s63 = scalar_lea.vmem %s1, 24
  %64 = vst [vmem:[%s63] sm:$0xff] %v46
  %s65 = scalar_lea.vmem %s1, 32
  %66 = vst [vmem:[%s65] sm:$0xff] %v53
  %s67 = scalar_lea.vmem %s1, 40
  %68 = vst [vmem:[%s67] sm:$0xff] %v59
  %s69 = scalar_lea.vmem %s0, 32
  %v70 = vld [vmem:[%s69] sm:$0xff]
  %s71 = scalar_lea.vmem %s0, 40
  %v72 = vld [vmem:[%s71] sm:$0xff]
  %s73 = scalar_lea.vmem %s0, 48
  %v74 = vld [vmem:[%s73] sm:$0xff]
  %s75 = scalar_lea.vmem %s0, 56
  %v76 = vld [vmem:[%s75] sm:$0xff]
  %v77 = vmul.f32 %v70, %v70
  %v78 = vmul.f32 %v72, %v72
  %v79 = vadd.f32 %v77, %v78
  %v80 = vmul.f32 %v74, %v74
  %v81 = vadd.f32 %v79, %v80
  %v82 = vmul.f32 %v76, %v76
  %v83 = vadd.f32 %v81, %v82
  %v84 = vadd.f32 %v83, 1e-08
  %v85 = vrsqrt.pop %v84
  %v86 = vmul.f32 %v70, %v85
  %v87 = vmul.f32 %v72, %v85
  %v88 = vmul.f32 %v74, %v85
  %v89 = vmul.f32 %v76, %v85
  %v90 = vmul.f32 %v87, %v87
  %v91 = vmul.f32 %v88, %v88
  %v92 = vmul.f32 %v89, %v89
  %v93 = vmul.f32 %v87, %v88
  %v94 = vmul.f32 %v87, %v89
  %v95 = vmul.f32 %v88, %v89
  %v96 = vmul.f32 %v86, %v87
  %v97 = vmul.f32 %v86, %v88
  %v98 = vmul.f32 %v86, %v89
  %v99 = vadd.f32 %v91, %v92
  %v100 = vmul.f32 %v99, 2.0
  %v101 = vsub.f32 1.0, %v100
  %v102 = vsub.f32 %v93, %v98
  %v103 = vmul.f32 %v102, 2.0
  %v104 = vadd.f32 %v94, %v97
  %v105 = vmul.f32 %v104, 2.0
  %v106 = vadd.f32 %v93, %v98
  %v107 = vmul.f32 %v106, 2.0
  %v108 = vadd.f32 %v90, %v92
  %v109 = vmul.f32 %v108, 2.0
  %v110 = vsub.f32 1.0, %v109
  %v111 = vsub.f32 %v95, %v96
  %v112 = vmul.f32 %v111, 2.0
  %v113 = vsub.f32 %v94, %v97
  %v114 = vmul.f32 %v113, 2.0
  %v115 = vadd.f32 %v95, %v96
  %v116 = vmul.f32 %v115, 2.0
  %v117 = vadd.f32 %v90, %v91
  %v118 = vmul.f32 %v117, 2.0
  %v119 = vsub.f32 1.0, %v118
  %v120 = vmul.f32 %v44, %v101
  %v121 = vmul.f32 %v46, %v107
  %v122 = vadd.f32 %v120, %v121
  %v123 = vmul.f32 %v48, %v114
  %v124 = vadd.f32 %v122, %v123
  %v125 = vmul.f32 %v44, %v103
  %v126 = vmul.f32 %v46, %v110
  %v127 = vadd.f32 %v125, %v126
  %v128 = vmul.f32 %v48, %v116
  %v129 = vadd.f32 %v127, %v128
  %v130 = vmul.f32 %v44, %v105
  %v131 = vmul.f32 %v46, %v112
  %v132 = vadd.f32 %v130, %v131
  %v133 = vmul.f32 %v48, %v119
  %v134 = vadd.f32 %v132, %v133
  %v135 = vmul.f32 %v50, %v101
  %v136 = vmul.f32 %v53, %v107
  %v137 = vadd.f32 %v135, %v136
  %v138 = vmul.f32 %v55, %v114
  %v139 = vadd.f32 %v137, %v138
  %v140 = vmul.f32 %v50, %v103
  %v141 = vmul.f32 %v53, %v110
  %v142 = vadd.f32 %v140, %v141
  %v143 = vmul.f32 %v55, %v116
  %v144 = vadd.f32 %v142, %v143
  %v145 = vmul.f32 %v50, %v105
  %v146 = vmul.f32 %v53, %v112
  %v147 = vadd.f32 %v145, %v146
  %v148 = vmul.f32 %v55, %v119
  %v149 = vadd.f32 %v147, %v148
  %v150 = vmul.f32 %v57, %v101
  %v151 = vmul.f32 %v59, %v107
  %v152 = vadd.f32 %v150, %v151
  %v153 = vmul.f32 %v62, %v114
  %v154 = vadd.f32 %v152, %v153
  %v155 = vmul.f32 %v57, %v103
  %v156 = vmul.f32 %v59, %v110
  %v157 = vadd.f32 %v155, %v156
  %v158 = vmul.f32 %v62, %v116
  %v159 = vadd.f32 %v157, %v158
  %v160 = vmul.f32 %v57, %v105
  %v161 = vmul.f32 %v59, %v112
  %v162 = vadd.f32 %v160, %v161
  %v163 = vmul.f32 %v62, %v119
  %v164 = vadd.f32 %v162, %v163
  %v165 = vmul.f32 %v129, 0.9
  %v166 = vadd.f32 %v46, %v165
  %v167 = vmul.f32 %v134, 0.1
  %v168 = vadd.f32 %v166, %v167
  %v169 = vmul.f32 %v144, 0.9
  %v170 = vadd.f32 %v53, %v169
  %v171 = vmul.f32 %v149, 0.1
  %v172 = vadd.f32 %v170, %v171
  %v173 = vmul.f32 %v159, 0.9
  %v174 = vadd.f32 %v59, %v173
  %v175 = vmul.f32 %v164, 0.1
  %v176 = vadd.f32 %v174, %v175
  %s177 = scalar_lea.vmem %s1, 48
  %178 = vst [vmem:[%s177] sm:$0xff] %v168
  %s179 = scalar_lea.vmem %s1, 56
  %180 = vst [vmem:[%s179] sm:$0xff] %v172
  %s181 = scalar_lea.vmem %s1, 64
  %182 = vst [vmem:[%s181] sm:$0xff] %v176
  %s183 = scalar_lea.vmem %s0, 64
  %v184 = vld [vmem:[%s183] sm:$0xff]
  %s185 = scalar_lea.vmem %s0, 72
  %v186 = vld [vmem:[%s185] sm:$0xff]
  %s187 = scalar_lea.vmem %s0, 80
  %v188 = vld [vmem:[%s187] sm:$0xff]
  %s189 = scalar_lea.vmem %s0, 88
  %v190 = vld [vmem:[%s189] sm:$0xff]
  %v191 = vmul.f32 %v184, %v184
  %v192 = vmul.f32 %v186, %v186
  %v193 = vadd.f32 %v191, %v192
  %v194 = vmul.f32 %v188, %v188
  %v195 = vadd.f32 %v193, %v194
  %v196 = vmul.f32 %v190, %v190
  %v197 = vadd.f32 %v195, %v196
  %v198 = vadd.f32 %v197, 1e-08
  %v199 = vrsqrt.pop %v198
  %v200 = vmul.f32 %v184, %v199
  %v201 = vmul.f32 %v186, %v199
  %v202 = vmul.f32 %v188, %v199
  %v203 = vmul.f32 %v190, %v199
  %v204 = vmul.f32 %v201, %v201
  %v205 = vmul.f32 %v203, %v203
  %v206 = vmul.f32 %v201, %v202
  %v207 = vmul.f32 %v202, %v203
  %v208 = vmul.f32 %v200, %v201
  %v209 = vmul.f32 %v200, %v203
  %v210 = vsub.f32 %v206, %v209
  %v211 = vmul.f32 %v210, 2.0
  %v212 = vadd.f32 %v204, %v205
  %v213 = vmul.f32 %v212, 2.0
  %v214 = vsub.f32 1.0, %v213
  %v215 = vadd.f32 %v207, %v208
  %v216 = vmul.f32 %v215, 2.0
  %v217 = vmul.f32 %v124, %v211
  %v218 = vmul.f32 %v129, %v214
  %v219 = vadd.f32 %v217, %v218
  %v220 = vmul.f32 %v134, %v216
  %v221 = vadd.f32 %v219, %v220
  %v222 = vmul.f32 %v139, %v211
  %v223 = vmul.f32 %v144, %v214
  %v224 = vadd.f32 %v222, %v223
  %v225 = vmul.f32 %v149, %v216
  %v226 = vadd.f32 %v224, %v225
  %v227 = vmul.f32 %v154, %v211
  %v228 = vmul.f32 %v159, %v214
  %v229 = vadd.f32 %v227, %v228
  %v230 = vmul.f32 %v164, %v216
  %v231 = vadd.f32 %v229, %v230
  %v232 = vmul.f32 %v221, 0.8
  %v233 = vadd.f32 %v168, %v232
  %v234 = vmul.f32 %v226, 0.8
  %v235 = vadd.f32 %v172, %v234
  %v236 = vmul.f32 %v231, 0.8
  %v237 = vadd.f32 %v176, %v236
  %s238 = scalar_lea.vmem %s1, 72
  %239 = vst [vmem:[%s238] sm:$0xff] %v233
  %s240 = scalar_lea.vmem %s1, 80
  %241 = vst [vmem:[%s240] sm:$0xff] %v235
  %s242 = scalar_lea.vmem %s1, 88
  %243 = vst [vmem:[%s242] sm:$0xff] %v237
  %v244 = vmul.f32 %v124, 0.5
  %v245 = vadd.f32 %v46, %v244
  %v246 = vmul.f32 %v129, 0.7
  %v247 = vadd.f32 %v245, %v246
  %v248 = vmul.f32 %v139, 0.5
  %v249 = vadd.f32 %v53, %v248
  %v250 = vmul.f32 %v144, 0.7
  %v251 = vadd.f32 %v249, %v250
  %v252 = vmul.f32 %v154, 0.5
  %v253 = vadd.f32 %v59, %v252
  %v254 = vmul.f32 %v159, 0.7
  %v255 = vadd.f32 %v253, %v254
  %s256 = scalar_lea.vmem %s1, 96
  %257 = vst [vmem:[%s256] sm:$0xff] %v247
  %s258 = scalar_lea.vmem %s1, 104
  %259 = vst [vmem:[%s258] sm:$0xff] %v251
  %s260 = scalar_lea.vmem %s1, 112
  %261 = vst [vmem:[%s260] sm:$0xff] %v255
  %s262 = scalar_lea.vmem %s0, 128
  %v263 = vld [vmem:[%s262] sm:$0xff]
  %s264 = scalar_lea.vmem %s0, 136
  %v265 = vld [vmem:[%s264] sm:$0xff]
  %s266 = scalar_lea.vmem %s0, 144
  %v267 = vld [vmem:[%s266] sm:$0xff]
  %s268 = scalar_lea.vmem %s0, 152
  %v269 = vld [vmem:[%s268] sm:$0xff]
  %v270 = vmul.f32 %v263, %v263
  %v271 = vmul.f32 %v265, %v265
  %v272 = vadd.f32 %v270, %v271
  %v273 = vmul.f32 %v267, %v267
  %v274 = vadd.f32 %v272, %v273
  %v275 = vmul.f32 %v269, %v269
  %v276 = vadd.f32 %v274, %v275
  %v277 = vadd.f32 %v276, 1e-08
  %v278 = vrsqrt.pop %v277
  %v279 = vmul.f32 %v263, %v278
  %v280 = vmul.f32 %v265, %v278
  %v281 = vmul.f32 %v267, %v278
  %v282 = vmul.f32 %v269, %v278
  %v283 = vmul.f32 %v281, %v281
  %v284 = vmul.f32 %v282, %v282
  %v285 = vmul.f32 %v280, %v281
  %v286 = vmul.f32 %v280, %v282
  %v287 = vmul.f32 %v279, %v281
  %v288 = vmul.f32 %v279, %v282
  %v289 = vadd.f32 %v283, %v284
  %v290 = vmul.f32 %v289, 2.0
  %v291 = vsub.f32 1.0, %v290
  %v292 = vadd.f32 %v285, %v288
  %v293 = vmul.f32 %v292, 2.0
  %v294 = vsub.f32 %v286, %v287
  %v295 = vmul.f32 %v294, 2.0
  %v296 = vmul.f32 %v124, %v291
  %v297 = vmul.f32 %v129, %v293
  %v298 = vadd.f32 %v296, %v297
  %v299 = vmul.f32 %v134, %v295
  %v300 = vadd.f32 %v298, %v299
  %v301 = vmul.f32 %v139, %v291
  %v302 = vmul.f32 %v144, %v293
  %v303 = vadd.f32 %v301, %v302
  %v304 = vmul.f32 %v149, %v295
  %v305 = vadd.f32 %v303, %v304
  %v306 = vmul.f32 %v154, %v291
  %v307 = vmul.f32 %v159, %v293
  %v308 = vadd.f32 %v306, %v307
  %v309 = vmul.f32 %v164, %v295
  %v310 = vadd.f32 %v308, %v309
  %v311 = vmul.f32 %v300, 0.6
  %v312 = vadd.f32 %v247, %v311
  %v313 = vmul.f32 %v305, 0.6
  %v314 = vadd.f32 %v251, %v313
  %v315 = vmul.f32 %v310, 0.6
  %v316 = vadd.f32 %v255, %v315
  %s317 = scalar_lea.vmem %s1, 120
  %318 = vst [vmem:[%s317] sm:$0xff] %v312
  %s319 = scalar_lea.vmem %s1, 128
  %320 = vst [vmem:[%s319] sm:$0xff] %v314
  %s321 = scalar_lea.vmem %s1, 136
  %322 = vst [vmem:[%s321] sm:$0xff] %v316
  %v323 = vmul.f32 %v124, -0.5
  %v324 = vadd.f32 %v46, %v323
  %v325 = vadd.f32 %v324, %v246
  %v326 = vmul.f32 %v139, -0.5
  %v327 = vadd.f32 %v53, %v326
  %v328 = vadd.f32 %v327, %v250
  %v329 = vmul.f32 %v154, -0.5
  %v330 = vadd.f32 %v59, %v329
  %v331 = vadd.f32 %v330, %v254
  %s332 = scalar_lea.vmem %s1, 144
  %333 = vst [vmem:[%s332] sm:$0xff] %v325
  %s334 = scalar_lea.vmem %s1, 152
  %335 = vst [vmem:[%s334] sm:$0xff] %v328
  %s336 = scalar_lea.vmem %s1, 160
  %337 = vst [vmem:[%s336] sm:$0xff] %v331
  %s338 = scalar_lea.vmem %s0, 192
  %v339 = vld [vmem:[%s338] sm:$0xff]
  %s340 = scalar_lea.vmem %s0, 200
  %v341 = vld [vmem:[%s340] sm:$0xff]
  %s342 = scalar_lea.vmem %s0, 208
  %v343 = vld [vmem:[%s342] sm:$0xff]
  %s344 = scalar_lea.vmem %s0, 216
  %v345 = vld [vmem:[%s344] sm:$0xff]
  %v346 = vmul.f32 %v339, %v339
  %v347 = vmul.f32 %v341, %v341
  %v348 = vadd.f32 %v346, %v347
  %v349 = vmul.f32 %v343, %v343
  %v350 = vadd.f32 %v348, %v349
  %v351 = vmul.f32 %v345, %v345
  %v352 = vadd.f32 %v350, %v351
  %v353 = vadd.f32 %v352, 1e-08
  %v354 = vrsqrt.pop %v353
  %v355 = vmul.f32 %v339, %v354
  %v356 = vmul.f32 %v341, %v354
  %v357 = vmul.f32 %v343, %v354
  %v358 = vmul.f32 %v345, %v354
  %v359 = vmul.f32 %v357, %v357
  %v360 = vmul.f32 %v358, %v358
  %v361 = vmul.f32 %v356, %v357
  %v362 = vmul.f32 %v356, %v358
  %v363 = vmul.f32 %v355, %v357
  %v364 = vmul.f32 %v355, %v358
  %v365 = vadd.f32 %v359, %v360
  %v366 = vmul.f32 %v365, 2.0
  %v367 = vsub.f32 1.0, %v366
  %v368 = vadd.f32 %v361, %v364
  %v369 = vmul.f32 %v368, 2.0
  %v370 = vsub.f32 %v362, %v363
  %v371 = vmul.f32 %v370, 2.0
  %v372 = vmul.f32 %v124, %v367
  %v373 = vmul.f32 %v129, %v369
  %v374 = vadd.f32 %v372, %v373
  %v375 = vmul.f32 %v134, %v371
  %v376 = vadd.f32 %v374, %v375
  %v377 = vmul.f32 %v139, %v367
  %v378 = vmul.f32 %v144, %v369
  %v379 = vadd.f32 %v377, %v378
  %v380 = vmul.f32 %v149, %v371
  %v381 = vadd.f32 %v379, %v380
  %v382 = vmul.f32 %v154, %v367
  %v383 = vmul.f32 %v159, %v369
  %v384 = vadd.f32 %v382, %v383
  %v385 = vmul.f32 %v164, %v371
  %v386 = vadd.f32 %v384, %v385
  %v387 = vmul.f32 %v376, -0.6
  %v388 = vadd.f32 %v325, %v387
  %v389 = vmul.f32 %v381, -0.6
  %v390 = vadd.f32 %v328, %v389
  %v391 = vmul.f32 %v386, -0.6
  %v392 = vadd.f32 %v331, %v391
  %s393 = scalar_lea.vmem %s1, 168
  %394 = vst [vmem:[%s393] sm:$0xff] %v388
  %s395 = scalar_lea.vmem %s1, 176
  %396 = vst [vmem:[%s395] sm:$0xff] %v390
  %s397 = scalar_lea.vmem %s1, 184
  %398 = vst [vmem:[%s397] sm:$0xff] %v392
  // Predicated region
  $region6: #{skeleton_forward.1} parent=0 // pred_check
    _
  $region7: #{skeleton_forward.1} parent=0 // pred_check_branch
    %400 = sbr.rel (0) target = $region9
  $region8: #{skeleton_forward.1} parent=0 // pred_region
    _
  $region9: #{skeleton_forward.1} parent=0 // pred_fallthru
    _
  // Predicated region
  $region10: #{skeleton_forward.1} parent=0 // pred_check
    _
  $region11: #{skeleton_forward.1} parent=0 // pred_check_branch
    %402 = sbr.rel (0) target = $region13
  $region12: #{skeleton_forward.1} parent=0 // pred_region
    _
  $region13: #{skeleton_forward.1} parent=0 // pred_fallthru
    _

</llo_original>
